<compile_context>
chip_gen: v6e
topology: v6e:2x2x1
jax: 0.10.0
libtpu: 0.0.40
codegen_flags: <defaults>
</compile_context>

<pallas_src>
import functools

import jax
import jax.numpy as jnp
from jax.experimental import pallas as pl
from jax.experimental.pallas import tpu as pltpu


# ----------------------------------------------------------------------------
# Kernel
# ----------------------------------------------------------------------------
def _critic_kernel(s_ref, a_ref,
                   ws_ref, wa_ref, b14_ref,
                   w25_ref, b25_ref,
                   w36_ref, b36_ref,
                   q_ref):
    # Layer 1 (both heads fused; s/a concat folded into two row-split matmuls).
    h = jnp.dot(s_ref[...], ws_ref[...], preferred_element_type=jnp.float32)
    h += jnp.dot(a_ref[...], wa_ref[...], preferred_element_type=jnp.float32)
    h = jnp.maximum(h + b14_ref[...], 0.0)                       # (TB, 2H)

    # Layer 2 (block-diagonal fused weight, one matmul).
    h = h.astype(w25_ref.dtype)
    h = jnp.dot(h, w25_ref[...], preferred_element_type=jnp.float32)
    h = jnp.maximum(h + b25_ref[...], 0.0)                       # (TB, 2H)

    # Layer 3 (fused output heads -> single (TB, 2) slab; q1=col0, q2=col1).
    h = h.astype(w36_ref.dtype)
    q = jnp.dot(h, w36_ref[...], preferred_element_type=jnp.float32)
    q_ref[...] = (q + b36_ref[...]).astype(q_ref.dtype)          # (TB, 2)


# ----------------------------------------------------------------------------
# Parameter packing (fuses the twin heads' weights, done once under jit)
# ----------------------------------------------------------------------------
def pack_critic_params(params, state_dim, compute_dtype=jnp.float32):
    """Fuse twin-head weights: W1||W4, block-diag(W2,W5), block(W3,W6)."""
    H = params["w1"].shape[1]
    cd = compute_dtype

    w14 = jnp.concatenate([params["w1"], params["w4"]], axis=1)   # (in_dim, 2H)
    ws = w14[:state_dim].astype(cd)                               # (S, 2H)
    wa = w14[state_dim:].astype(cd)                               # (A, 2H)
    b14 = jnp.concatenate([params["b1"], params["b4"]], axis=1).astype(jnp.float32)

    zhh = jnp.zeros((H, H), params["w2"].dtype)
    w25 = jnp.block([[params["w2"], zhh],
                     [zhh, params["w5"]]]).astype(cd)             # (2H, 2H)
    b25 = jnp.concatenate([params["b2"], params["b5"]], axis=1).astype(jnp.float32)

    zh1 = jnp.zeros((H, 1), params["w3"].dtype)
    w36 = jnp.block([[params["w3"], zh1],
                     [zh1, params["w6"]]]).astype(cd)             # (2H, 2)
    b36 = jnp.concatenate([params["b3"], params["b6"]], axis=1).astype(jnp.float32)

    return ws, wa, b14, w25, b25, w36, b36


# ----------------------------------------------------------------------------
# Wrapper
# ----------------------------------------------------------------------------
@functools.partial(jax.jit, static_argnames=("tb_max", "use_bf16"))
def critic_forward(s, a, params, *, tb_max=1024, use_bf16=False):
    """Pallas equivalent of Critic.forward(s, a) -> (q1, q2)."""
    B, state_dim = s.shape
    action_dim = a.shape[1]

    # Batch tile: full batch if it fits the cap, else a multiple-of-8 tile so
    # the (8, 128) sublane rule is satisfied on every block.
    if B <= tb_max:
        TB = B
    else:
        TB = max(8, (tb_max // 8) * 8)
    grid = (pl.cdiv(B, TB),)

    compute_dtype = jnp.bfloat16 if use_bf16 else jnp.float32
    ws, wa, b14, w25, b25, w36, b36 = pack_critic_params(
        params, state_dim, compute_dtype)
    H2 = ws.shape[1]  # 2 * hidden_width

    s_c = s.astype(compute_dtype)
    a_c = a.astype(compute_dtype)

    act_spec_s = pl.BlockSpec((TB, state_dim), lambda i: (i, 0))
    act_spec_a = pl.BlockSpec((TB, action_dim), lambda i: (i, 0))

    def _resident(shape):  # weights/biases stay VMEM-resident across the grid
        return pl.BlockSpec(shape, lambda i: (0, 0))

    q = pl.pallas_call(
        _critic_kernel,
        out_shape=jax.ShapeDtypeStruct((B, 2), jnp.float32),
        grid=grid,
        in_specs=[
            act_spec_s, act_spec_a,
            _resident((state_dim, H2)), _resident((action_dim, H2)),
            _resident((1, H2)),
            _resident((H2, H2)), _resident((1, H2)),
            _resident((H2, 2)), _resident((1, 2)),
        ],
        out_specs=pl.BlockSpec((TB, 2), lambda i: (i, 0)),
        compiler_params=pltpu.CompilerParams(
            dimension_semantics=("parallel",)),
    )(s_c, a_c, ws, wa, b14, w25, b25, w36, b36)

    return q[:, 0:1], q[:, 1:2]


# ----------------------------------------------------------------------------
# Init + reference
# ----------------------------------------------------------------------------
def init_critic_params(key, state_dim, action_dim, hidden_width):
    """Deterministic parameter init (shapes match the Critic's nn.Linear layers)."""
    in_dim = state_dim + action_dim
    shapes = {
        "w1": (in_dim, hidden_width), "b1": (1, hidden_width),
        "w2": (hidden_width, hidden_width), "b2": (1, hidden_width),
        "w3": (hidden_width, 1), "b3": (1, 1),
        "w4": (in_dim, hidden_width), "b4": (1, hidden_width),
        "w5": (hidden_width, hidden_width), "b5": (1, hidden_width),
        "w6": (hidden_width, 1), "b6": (1, 1),
    }
    params = {}
    keys = jax.random.split(key, len(shapes))
    for k, (name, shp) in zip(keys, sorted(shapes.items())):
        fan_in = shp[0] if name.startswith("w") else max(shp[1], 1)
        bound = 1.0 / jnp.sqrt(jnp.asarray(fan_in, jnp.float32))
        params[name] = jax.random.uniform(k, shp, jnp.float32, -bound, bound)
    return params


def _reference_forward(s, a, p):
    sa = jnp.concatenate([s, a], axis=1)
    h = jnp.maximum(sa @ p["w1"] + p["b1"], 0.0)
    h = jnp.maximum(h @ p["w2"] + p["b2"], 0.0)
    q1 = h @ p["w3"] + p["b3"]
    g = jnp.maximum(sa @ p["w4"] + p["b4"], 0.0)
    g = jnp.maximum(g @ p["w5"] + p["b5"], 0.0)
    q2 = g @ p["w6"] + p["b6"]
    return q1, q2


if __name__ == "__main__":
    state_dim, action_dim, hidden_width = 8, 4, 32
    batch = 2

    key = jax.random.PRNGKey(0)
    k_s, k_a, k_p = jax.random.split(key, 3)
    s = jax.random.normal(k_s, (batch, state_dim), jnp.float32)
    a = jax.random.normal(k_a, (batch, action_dim), jnp.float32)
    params = init_critic_params(k_p, state_dim, action_dim, hidden_width)

    q1, q2 = critic_forward(s, a, params)
    jax.block_until_ready((q1, q2))

    q1_ref, q2_ref = _reference_forward(s, a, params)
    assert q1.shape == (batch, 1) and q2.shape == (batch, 1)
    assert jnp.allclose(q1, q1_ref, atol=1e-5), "q1 mismatch"
    assert jnp.allclose(q2, q2_ref, atol=1e-5), "q2 mismatch"

    # Also exercise a larger, tiled batch (multiple grid steps + partial tail).
    bigB = 2304
    s_big = jax.random.normal(k_s, (bigB, state_dim), jnp.float32)
    a_big = jax.random.normal(k_a, (bigB, action_dim), jnp.float32)
    q1b, q2b = critic_forward(s_big, a_big, params)
    jax.block_until_ready((q1b, q2b))
    q1b_ref, q2b_ref = _reference_forward(s_big, a_big, params)
    assert jnp.allclose(q1b, q1b_ref, atol=1e-5), "q1 (tiled) mismatch"
    assert jnp.allclose(q2b, q2b_ref, atol=1e-5), "q2 (tiled) mismatch"

    print("KERNEL_OK")
</pallas_src>

<mosaic_0001>
module attributes {stable_mosaic.version = 11 : i64} {
  func.func @_critic_kernel(%arg0: i32, %arg1: memref<2x8xf32, #tpu.memory_space<vmem>>, %arg2: memref<2x4xf32, #tpu.memory_space<vmem>>, %arg3: memref<8x64xf32, #tpu.memory_space<vmem>>, %arg4: memref<4x64xf32, #tpu.memory_space<vmem>>, %arg5: memref<1x64xf32, #tpu.memory_space<vmem>>, %arg6: memref<64x64xf32, #tpu.memory_space<vmem>>, %arg7: memref<1x64xf32, #tpu.memory_space<vmem>>, %arg8: memref<64x2xf32, #tpu.memory_space<vmem>>, %arg9: memref<1x2xf32, #tpu.memory_space<vmem>>, %arg10: memref<2x2xf32, #tpu.memory_space<vmem>>) attributes {dimension_semantics = [#tpu.dimension_semantics<parallel>], iteration_bounds = array<i64: 1>, scalar_prefetch = 0 : i64, scratch_operands = 0 : i64, tpu.core_type = #tpu.core_type<tc>, window_params = [{transform_indices = @transform_0, window_bounds = array<i64: 2, 8>}, {transform_indices = @transform_1, window_bounds = array<i64: 2, 4>}, {pipeline_mode = #tpu.pipeline_mode<synchronous>, transform_indices = @transform_2, window_bounds = array<i64: 8, 64>}, {pipeline_mode = #tpu.pipeline_mode<synchronous>, transform_indices = @transform_3, window_bounds = array<i64: 4, 64>}, {pipeline_mode = #tpu.pipeline_mode<synchronous>, transform_indices = @transform_4, window_bounds = array<i64: 1, 64>}, {pipeline_mode = #tpu.pipeline_mode<synchronous>, transform_indices = @transform_5, window_bounds = array<i64: 64, 64>}, {pipeline_mode = #tpu.pipeline_mode<synchronous>, transform_indices = @transform_6, window_bounds = array<i64: 1, 64>}, {pipeline_mode = #tpu.pipeline_mode<synchronous>, transform_indices = @transform_7, window_bounds = array<i64: 64, 2>}, {pipeline_mode = #tpu.pipeline_mode<synchronous>, transform_indices = @transform_8, window_bounds = array<i64: 1, 2>}, {transform_indices = @transform_9, window_bounds = array<i64: 2, 2>}]} {
    %c0 = arith.constant 0 : index
    %c0_0 = arith.constant 0 : index
    %0 = vector.load %arg1[%c0, %c0_0] : memref<2x8xf32, #tpu.memory_space<vmem>>, vector<2x8xf32>
    %c0_1 = arith.constant 0 : index
    %c0_2 = arith.constant 0 : index
    %1 = vector.load %arg3[%c0_1, %c0_2] : memref<8x64xf32, #tpu.memory_space<vmem>>, vector<8x64xf32>
    %cst = arith.constant dense<0.000000e+00> : vector<2x64xf32>
    %2 = tpu.matmul %0, %1, %cst {dimension_numbers = #tpu.dot_dimension_numbers<[1], [0], [0], [1], [0, 0, 1, 1], [], []>} : vector<2x8xf32>, vector<8x64xf32>, vector<2x64xf32> -> vector<2x64xf32>
    %c0_3 = arith.constant 0 : index
    %c0_4 = arith.constant 0 : index
    %3 = vector.load %arg2[%c0_3, %c0_4] : memref<2x4xf32, #tpu.memory_space<vmem>>, vector<2x4xf32>
    %c0_5 = arith.constant 0 : index
    %c0_6 = arith.constant 0 : index
    %4 = vector.load %arg4[%c0_5, %c0_6] : memref<4x64xf32, #tpu.memory_space<vmem>>, vector<4x64xf32>
    %cst_7 = arith.constant dense<0.000000e+00> : vector<2x64xf32>
    %5 = tpu.matmul %3, %4, %cst_7 {dimension_numbers = #tpu.dot_dimension_numbers<[1], [0], [0], [1], [0, 0, 1, 1], [], []>} : vector<2x4xf32>, vector<4x64xf32>, vector<2x64xf32> -> vector<2x64xf32>
    %6 = arith.addf %2, %5 : vector<2x64xf32>
    %c0_8 = arith.constant 0 : index
    %c0_9 = arith.constant 0 : index
    %7 = vector.load %arg5[%c0_8, %c0_9] : memref<1x64xf32, #tpu.memory_space<vmem>>, vector<1x64xf32>
    %8 = vector.broadcast %7 : vector<1x64xf32> to vector<2x64xf32>
    %9 = arith.addf %6, %8 : vector<2x64xf32>
    %cst_10 = arith.constant 0.000000e+00 : f32
    %10 = vector.broadcast %cst_10 : f32 to vector<2x64xf32>
    %11 = arith.maximumf %9, %10 : vector<2x64xf32>
    %c0_11 = arith.constant 0 : index
    %c0_12 = arith.constant 0 : index
    %12 = vector.load %arg6[%c0_11, %c0_12] : memref<64x64xf32, #tpu.memory_space<vmem>>, vector<64x64xf32>
    %cst_13 = arith.constant dense<0.000000e+00> : vector<2x64xf32>
    %13 = tpu.matmul %11, %12, %cst_13 {dimension_numbers = #tpu.dot_dimension_numbers<[1], [0], [0], [1], [0, 0, 1, 1], [], []>} : vector<2x64xf32>, vector<64x64xf32>, vector<2x64xf32> -> vector<2x64xf32>
    %c0_14 = arith.constant 0 : index
    %c0_15 = arith.constant 0 : index
    %14 = vector.load %arg7[%c0_14, %c0_15] : memref<1x64xf32, #tpu.memory_space<vmem>>, vector<1x64xf32>
    %15 = vector.broadcast %14 : vector<1x64xf32> to vector<2x64xf32>
    %16 = arith.addf %13, %15 : vector<2x64xf32>
    %cst_16 = arith.constant 0.000000e+00 : f32
    %17 = vector.broadcast %cst_16 : f32 to vector<2x64xf32>
    %18 = arith.maximumf %16, %17 : vector<2x64xf32>
    %c0_17 = arith.constant 0 : index
    %c0_18 = arith.constant 0 : index
    %19 = vector.load %arg8[%c0_17, %c0_18] : memref<64x2xf32, #tpu.memory_space<vmem>>, vector<64x2xf32>
    %cst_19 = arith.constant dense<0.000000e+00> : vector<2x2xf32>
    %20 = tpu.matmul %18, %19, %cst_19 {dimension_numbers = #tpu.dot_dimension_numbers<[1], [0], [0], [1], [0, 0, 1, 1], [], []>} : vector<2x64xf32>, vector<64x2xf32>, vector<2x2xf32> -> vector<2x2xf32>
    %c0_20 = arith.constant 0 : index
    %c0_21 = arith.constant 0 : index
    %21 = vector.load %arg9[%c0_20, %c0_21] : memref<1x2xf32, #tpu.memory_space<vmem>>, vector<1x2xf32>
    %22 = vector.broadcast %21 : vector<1x2xf32> to vector<2x2xf32>
    %23 = arith.addf %20, %22 : vector<2x2xf32>
    %c0_22 = arith.constant 0 : index
    %c0_23 = arith.constant 0 : index
    %24 = vector.load %arg10[%c0_22, %c0_23] : memref<2x2xf32, #tpu.memory_space<vmem>>, vector<2x2xf32>
    tpu.vector_store %arg10[%c0_22, %c0_23], %23 {strides = array<i32>} : memref<2x2xf32, #tpu.memory_space<vmem>>, vector<2x2xf32>,
    return
  }
  func.func @transform_0(%arg0: i32) -> (i32, i32) {
    %c0_i32 = arith.constant 0 : i32
    %c0_i32_0 = arith.constant 0 : i32
    return %arg0, %c0_i32 : i32, i32
  }
  func.func @transform_1(%arg0: i32) -> (i32, i32) {
    %c0_i32 = arith.constant 0 : i32
    %c0_i32_0 = arith.constant 0 : i32
    return %arg0, %c0_i32 : i32, i32
  }
  func.func @transform_2(%arg0: i32) -> (i32, i32) {
    %c0_i32 = arith.constant 0 : i32
    %c0_i32_0 = arith.constant 0 : i32
    %c0_i32_1 = arith.constant 0 : i32
    return %c0_i32, %c0_i32_0 : i32, i32
  }
  func.func @transform_3(%arg0: i32) -> (i32, i32) {
    %c0_i32 = arith.constant 0 : i32
    %c0_i32_0 = arith.constant 0 : i32
    %c0_i32_1 = arith.constant 0 : i32
    return %c0_i32, %c0_i32_0 : i32, i32
  }
  func.func @transform_4(%arg0: i32) -> (i32, i32) {
    %c0_i32 = arith.constant 0 : i32
    %c0_i32_0 = arith.constant 0 : i32
    %c0_i32_1 = arith.constant 0 : i32
    return %c0_i32, %c0_i32_0 : i32, i32
  }
  func.func @transform_5(%arg0: i32) -> (i32, i32) {
    %c0_i32 = arith.constant 0 : i32
    %c0_i32_0 = arith.constant 0 : i32
    %c0_i32_1 = arith.constant 0 : i32
    return %c0_i32, %c0_i32_0 : i32, i32
  }
  func.func @transform_6(%arg0: i32) -> (i32, i32) {
    %c0_i32 = arith.constant 0 : i32
    %c0_i32_0 = arith.constant 0 : i32
    %c0_i32_1 = arith.constant 0 : i32
    return %c0_i32, %c0_i32_0 : i32, i32
  }
  func.func @transform_7(%arg0: i32) -> (i32, i32) {
    %c0_i32 = arith.constant 0 : i32
    %c0_i32_0 = arith.constant 0 : i32
    %c0_i32_1 = arith.constant 0 : i32
    return %c0_i32, %c0_i32_0 : i32, i32
  }
  func.func @transform_8(%arg0: i32) -> (i32, i32) {
    %c0_i32 = arith.constant 0 : i32
    %c0_i32_0 = arith.constant 0 : i32
    %c0_i32_1 = arith.constant 0 : i32
    return %c0_i32, %c0_i32_0 : i32, i32
  }
  func.func @transform_9(%arg0: i32) -> (i32, i32) {
    %c0_i32 = arith.constant 0 : i32
    %c0_i32_0 = arith.constant 0 : i32
    return %arg0, %c0_i32 : i32, i32
  }
}

</mosaic_0001>

<llo_original>
// kernel: critic_forward.1
$region0: #{critic_forward.1}
  #allocation0 [shape = 'u32[]', space=smem, size = 0x4, offset = 0x4, fixed_abs, tag = 'smem constant byte address 0x4 - core index']
  #allocation1 [shape = 'u32[144,128]{1,0:T(1,128)}', space=vmem, size = 0x12000, scoped, tag = 'internal scratch']
  %s0 = inlined_call_operand.vmem [shape: f32[2,8], index: 0, kind: input, shape index: {}]
  %s1 = inlined_call_operand.vmem [shape: f32[2,4], index: 1, kind: input, shape index: {}]
  %s2 = inlined_call_operand.vmem [shape: f32[8,64], index: 2, kind: input, shape index: {}]
  %s3 = inlined_call_operand.vmem [shape: f32[4,64], index: 3, kind: input, shape index: {}]
  %s4 = inlined_call_operand.vmem [shape: f32[1,64], index: 4, kind: input, shape index: {}]
  %s5 = inlined_call_operand.vmem [shape: f32[64,64], index: 5, kind: input, shape index: {}]
  %s6 = inlined_call_operand.vmem [shape: f32[1,64], index: 6, kind: input, shape index: {}]
  %s7 = inlined_call_operand.vmem [shape: f32[64,2], index: 7, kind: input, shape index: {}]
  %s8 = inlined_call_operand.vmem [shape: f32[1,2], index: 8, kind: input, shape index: {}]
  %s9 = inlined_call_operand.vmem [shape: f32[2,2], index: 9, kind: output, shape index: {}]
  %s10 = sld [smem:[#allocation0]]
  $region46: #{critic_forward.1} parent=0
    _
  %s12 = ssub.s32 1, %s10
  %s13 = scalar_select 0, %s12, %s10
  // Predicated region
  $region2: #{critic_forward.1} parent=0 // pred_check
    _
  $region3: #{critic_forward.1} parent=0 // pred_check_branch
    %15 = sbr.rel (0) target = $region5
  $region4: #{critic_forward.1} parent=0 // pred_region
    _
  $region5: #{critic_forward.1} parent=0 // pred_fallthru
    _
  // Predicated region
  $region6: #{critic_forward.1} parent=0 // pred_check
    _
  $region7: #{critic_forward.1} parent=0 // pred_check_branch
    %17 = sbr.rel (0) target = $region9
  $region8: #{critic_forward.1} parent=0 // pred_region
    _
  $region9: #{critic_forward.1} parent=0 // pred_fallthru
    _
  // Predicated region
  $region10: #{critic_forward.1} parent=0 // pred_check
    _
  $region11: #{critic_forward.1} parent=0 // pred_check_branch
    %19 = sbr.rel (0) target = $region13
  $region12: #{critic_forward.1} parent=0 // pred_region
    _
  $region13: #{critic_forward.1} parent=0 // pred_fallthru
    _
  // Predicated region
  $region14: #{critic_forward.1} parent=0 // pred_check
    _
  $region15: #{critic_forward.1} parent=0 // pred_check_branch
    %21 = sbr.rel (0) target = $region17
  $region16: #{critic_forward.1} parent=0 // pred_region
    _
  $region17: #{critic_forward.1} parent=0 // pred_fallthru
    _
  // Predicated region
  $region18: #{critic_forward.1} parent=0 // pred_check
    _
  $region19: #{critic_forward.1} parent=0 // pred_check_branch
    %23 = sbr.rel (0) target = $region21
  $region20: #{critic_forward.1} parent=0 // pred_region
    _
  $region21: #{critic_forward.1} parent=0 // pred_fallthru
    _
  // Predicated region
  $region22: #{critic_forward.1} parent=0 // pred_check
    _
  $region23: #{critic_forward.1} parent=0 // pred_check_branch
    %25 = sbr.rel (0) target = $region25
  $region24: #{critic_forward.1} parent=0 // pred_region
    _
  $region25: #{critic_forward.1} parent=0 // pred_fallthru
    _
  // Predicated region
  $region26: #{critic_forward.1} parent=0 // pred_check
    _
  $region27: #{critic_forward.1} parent=0 // pred_check_branch
    %27 = sbr.rel (0) target = $region29
  $region28: #{critic_forward.1} parent=0 // pred_region
    _
  $region29: #{critic_forward.1} parent=0 // pred_fallthru
    _
  // Predicated region
  $region30: #{critic_forward.1} parent=0 // pred_check
    _
  $region31: #{critic_forward.1} parent=0 // pred_check_branch
    %29 = sbr.rel (0) target = $region33
  $region32: #{critic_forward.1} parent=0 // pred_region
    _
  $region33: #{critic_forward.1} parent=0 // pred_fallthru
    _
  // Predicated region
  $region34: #{critic_forward.1} parent=0 // pred_check
    _
  $region35: #{critic_forward.1} parent=0 // pred_check_branch
    %31 = sbr.rel (0) target = $region37
  $region36: #{critic_forward.1} parent=0 // pred_region
    _
  $region37: #{critic_forward.1} parent=0 // pred_fallthru
    _
  %v32 = vld [vmem:[%s0] sm:$0x3]
  %v33 = vld [vmem:[%s2] sm:$0xff]
  %v34 = vld [vmem:[%s1] sm:$0x3]
  %v35 = vld [vmem:[%s3] sm:$0xf]
  %vm36 = vcmask 31744
  %v38 = vsel %vm36, %v34, 0
  %vm40 = vcmask 1043456
  %v42 = vsel %vm40, %v35, 0
  %44 = vmatprep.subr.mxu0 0.0
  %45 = vmatpush1.msra.mxu0 0.0
  %46 = vmatprep.subr.mxu0 0.0
  %47 = vmatpush1.msra.mxu0 0.0
  %48 = vmatprep.subr.mxu0 0.0
  %49 = vmatpush1.msra.mxu0 0.0
  %50 = vmatprep.subr.mxu0 0.0
  %51 = vmatpush1.msra.mxu0 0.0
  %52 = vmatprep.subr.mxu0 0.0
  %53 = vmatpush1.msra.mxu0 0.0
  %54 = vmatprep.subr.mxu0 0.0
  %55 = vmatpush1.msra.mxu0 0.0
  %56 = vmatprep.subr.mxu0 0.0
  %57 = vmatpush1.msra.mxu0 0.0
  %58 = vmatprep.subr.mxu0 0.0
  %59 = vmatpush1.msra.mxu0 0.0
  %60 = vmatprep.subr.mxu0 0.0
  %61 = vmatpush1.msra.mxu0 0.0
  %62 = vmatprep.subr.mxu0 0.0
  %63 = vmatpush1.msra.mxu0 0.0
  %64 = vmatprep.subr.mxu0 0.0
  %65 = vmatpush1.msra.mxu0 0.0
  %66 = vmatprep.subr.mxu0 0.0
  %67 = vmatpush1.msra.mxu0 0.0
  %68 = vmatprep.subr.mxu0 0.0
  %69 = vmatpush1.msra.mxu0 0.0
  %70 = vmatprep.subr.mxu0 0.0
  %71 = vmatpush1.msra.mxu0 0.0
  %72 = vmatprep.subr.mxu0 0.0
  %73 = vmatpush1.msra.mxu0 0.0
  %74 = vmatprep.subr.mxu0 0.0
  %75 = vmatpush1.msra.mxu0 %v42
  %76 = vmatprep.subr.mxu0 0.0
  %77 = vmatpush2.msra.mxu0 0.0
  %78 = vmatprep.subr.mxu0 0.0
  %79 = vmatpush2.msra.mxu0 0.0
  %80 = vmatprep.subr.mxu0 0.0
  %81 = vmatpush2.msra.mxu0 0.0
  %82 = vmatprep.subr.mxu0 0.0
  %83 = vmatpush2.msra.mxu0 0.0
  %84 = vmatprep.subr.mxu0 0.0
  %85 = vmatpush2.msra.mxu0 0.0
  %86 = vmatprep.subr.mxu0 0.0
  %87 = vmatpush2.msra.mxu0 0.0
  %88 = vmatprep.subr.mxu0 0.0
  %89 = vmatpush2.msra.mxu0 0.0
  %90 = vmatprep.subr.mxu0 0.0
  %91 = vmatpush2.msra.mxu0 0.0
  %92 = vmatprep.subr.mxu0 0.0
  %93 = vmatpush2.msra.mxu0 0.0
  %94 = vmatprep.subr.mxu0 0.0
  %95 = vmatpush2.msra.mxu0 0.0
  %96 = vmatprep.subr.mxu0 0.0
  %97 = vmatpush2.msra.mxu0 0.0
  %98 = vmatprep.subr.mxu0 0.0
  %99 = vmatpush2.msra.mxu0 0.0
  %100 = vmatprep.subr.mxu0 0.0
  %101 = vmatpush2.msra.mxu0 0.0
  %102 = vmatprep.subr.mxu0 0.0
  %103 = vmatpush2.msra.mxu0 0.0
  %104 = vmatprep.subr.mxu0 0.0
  %105 = vmatpush2.msra.mxu0 0.0
  %106 = vmatprep.subr.mxu0 0.0
  %107 = vmatpush2.msra.mxu0 0.0
  %108 = vmatprep.mubr.f32.mxu0 0.0
  %109 = vmatmul.mubr.f32.gmra.mxu0 %v38
  %v110 = vpop.f32.mrf.mxu0
  %v111 = vadd.f32 0.0, %v110
  %v112 = vpop.f32.mrf.mxu0
  %113 = vdwg.mxu0
  %vm114 = vcmask 64512
  %v116 = vsel %vm114, %v32, 0
  %118 = vmatprep.subr.mxu0 0.0
  %119 = vmatpush1.msra.mxu0 0.0
  %120 = vmatprep.subr.mxu0 0.0
  %121 = vmatpush1.msra.mxu0 0.0
  %122 = vmatprep.subr.mxu0 0.0
  %123 = vmatpush1.msra.mxu0 0.0
  %124 = vmatprep.subr.mxu0 0.0
  %125 = vmatpush1.msra.mxu0 0.0
  %126 = vmatprep.subr.mxu0 0.0
  %127 = vmatpush1.msra.mxu0 0.0
  %128 = vmatprep.subr.mxu0 0.0
  %129 = vmatpush1.msra.mxu0 0.0
  %130 = vmatprep.subr.mxu0 0.0
  %131 = vmatpush1.msra.mxu0 0.0
  %132 = vmatprep.subr.mxu0 0.0
  %133 = vmatpush1.msra.mxu0 0.0
  %134 = vmatprep.subr.mxu0 0.0
  %135 = vmatpush1.msra.mxu0 0.0
  %136 = vmatprep.subr.mxu0 0.0
  %137 = vmatpush1.msra.mxu0 0.0
  %138 = vmatprep.subr.mxu0 0.0
  %139 = vmatpush1.msra.mxu0 0.0
  %140 = vmatprep.subr.mxu0 0.0
  %141 = vmatpush1.msra.mxu0 0.0
  %142 = vmatprep.subr.mxu0 0.0
  %143 = vmatpush1.msra.mxu0 0.0
  %144 = vmatprep.subr.mxu0 0.0
  %145 = vmatpush1.msra.mxu0 0.0
  %146 = vmatprep.subr.mxu0 0.0
  %147 = vmatpush1.msra.mxu0 0.0
  %148 = vmatprep.subr.mxu0 0.0
  %149 = vmatpush1.msra.mxu0 %v33
  %150 = vmatprep.subr.mxu0 0.0
  %151 = vmatpush2.msra.mxu0 0.0
  %152 = vmatprep.subr.mxu0 0.0
  %153 = vmatpush2.msra.mxu0 0.0
  %154 = vmatprep.subr.mxu0 0.0
  %155 = vmatpush2.msra.mxu0 0.0
  %156 = vmatprep.subr.mxu0 0.0
  %157 = vmatpush2.msra.mxu0 0.0
  %158 = vmatprep.subr.mxu0 0.0
  %159 = vmatpush2.msra.mxu0 0.0
  %160 = vmatprep.subr.mxu0 0.0
  %161 = vmatpush2.msra.mxu0 0.0
  %162 = vmatprep.subr.mxu0 0.0
  %163 = vmatpush2.msra.mxu0 0.0
  %164 = vmatprep.subr.mxu0 0.0
  %165 = vmatpush2.msra.mxu0 0.0
  %166 = vmatprep.subr.mxu0 0.0
  %167 = vmatpush2.msra.mxu0 0.0
  %168 = vmatprep.subr.mxu0 0.0
  %169 = vmatpush2.msra.mxu0 0.0
  %170 = vmatprep.subr.mxu0 0.0
  %171 = vmatpush2.msra.mxu0 0.0
  %172 = vmatprep.subr.mxu0 0.0
  %173 = vmatpush2.msra.mxu0 0.0
  %174 = vmatprep.subr.mxu0 0.0
  %175 = vmatpush2.msra.mxu0 0.0
  %176 = vmatprep.subr.mxu0 0.0
  %177 = vmatpush2.msra.mxu0 0.0
  %178 = vmatprep.subr.mxu0 0.0
  %179 = vmatpush2.msra.mxu0 0.0
  %180 = vmatprep.subr.mxu0 0.0
  %181 = vmatpush2.msra.mxu0 0.0
  %182 = vmatprep.mubr.f32.mxu0 0.0
  %183 = vmatmul.mubr.f32.gmra.mxu0 %v116
  %v184 = vpop.f32.mrf.mxu0
  %v185 = vadd.f32 %v111, %v184
  %v186 = vpop.f32.mrf.mxu0
  %187 = vdwg.mxu0
  %v188 = vld [vmem:[%s4] sm:$0x1]
  %v190 = vlaneseq
  %v191 = vshrl.u32 %v190, 7
  %v192 = vsub.s32 0, %v191
  %v193 = vrot.slane %v188, %v192
  %v195 = vadd.f32 %v185, %v193
  %v196 = vmax.f32 %v195, 0.0
  %v197 = vld [vmem:[%s5] sm:$0xff]
  %v198 = vld [vmem:[%s5 + $0x8] sm:$0xff]
  %v199 = vld [vmem:[%s5 + $0x10] sm:$0xff]
  %v200 = vld [vmem:[%s5 + $0x18] sm:$0xff]
  %v201 = vld [vmem:[%s5 + $0x20] sm:$0xff]
  %v202 = vld [vmem:[%s5 + $0x28] sm:$0xff]
  %v203 = vld [vmem:[%s5 + $0x30] sm:$0xff]
  %v204 = vld [vmem:[%s5 + $0x38] sm:$0xff]
  %v205 = vld [vmem:[%s6] sm:$0x1]
  %v207 = vlaneseq
  %v208 = vshrl.u32 %v207, 7
  %v209 = vsub.s32 0, %v208
  %v210 = vrot.slane %v205, %v209
  %vm212 = vcmask 523264
  %v214 = vsel %vm212, %v196, 0
  %216 = vmatprep.subr.mxu0 0.0
  %217 = vmatpush1.msra.mxu0 0.0
  %218 = vmatprep.subr.mxu0 0.0
  %219 = vmatpush1.msra.mxu0 0.0
  %220 = vmatprep.subr.mxu0 0.0
  %221 = vmatpush1.msra.mxu0 0.0
  %222 = vmatprep.subr.mxu0 0.0
  %223 = vmatpush1.msra.mxu0 0.0
  %224 = vmatprep.subr.mxu0 0.0
  %225 = vmatpush1.msra.mxu0 0.0
  %226 = vmatprep.subr.mxu0 0.0
  %227 = vmatpush1.msra.mxu0 0.0
  %228 = vmatprep.subr.mxu0 0.0
  %229 = vmatpush1.msra.mxu0 0.0
  %230 = vmatprep.subr.mxu0 0.0
  %231 = vmatpush1.msra.mxu0 0.0
  %232 = vmatprep.subr.mxu0 0.0
  %233 = vmatpush1.msra.mxu0 %v204
  %234 = vmatprep.subr.mxu0 0.0
  %235 = vmatpush1.msra.mxu0 %v203
  %236 = vmatprep.subr.mxu0 0.0
  %237 = vmatpush1.msra.mxu0 %v202
  %238 = vmatprep.subr.mxu0 0.0
  %239 = vmatpush1.msra.mxu0 %v201
  %240 = vmatprep.subr.mxu0 0.0
  %241 = vmatpush1.msra.mxu0 %v200
  %242 = vmatprep.subr.mxu0 0.0
  %243 = vmatpush1.msra.mxu0 %v199
  %244 = vmatprep.subr.mxu0 0.0
  %245 = vmatpush1.msra.mxu0 %v198
  %246 = vmatprep.subr.mxu0 0.0
  %247 = vmatpush1.msra.mxu0 %v197
  %248 = vmatprep.subr.mxu0 0.0
  %249 = vmatpush2.msra.mxu0 0.0
  %250 = vmatprep.subr.mxu0 0.0
  %251 = vmatpush2.msra.mxu0 0.0
  %252 = vmatprep.subr.mxu0 0.0
  %253 = vmatpush2.msra.mxu0 0.0
  %254 = vmatprep.subr.mxu0 0.0
  %255 = vmatpush2.msra.mxu0 0.0
  %256 = vmatprep.subr.mxu0 0.0
  %257 = vmatpush2.msra.mxu0 0.0
  %258 = vmatprep.subr.mxu0 0.0
  %259 = vmatpush2.msra.mxu0 0.0
  %260 = vmatprep.subr.mxu0 0.0
  %261 = vmatpush2.msra.mxu0 0.0
  %262 = vmatprep.subr.mxu0 0.0
  %263 = vmatpush2.msra.mxu0 0.0
  %264 = vmatprep.subr.mxu0 0.0
  %265 = vmatpush2.msra.mxu0 0.0
  %266 = vmatprep.subr.mxu0 0.0
  %267 = vmatpush2.msra.mxu0 0.0
  %268 = vmatprep.subr.mxu0 0.0
  %269 = vmatpush2.msra.mxu0 0.0
  %270 = vmatprep.subr.mxu0 0.0
  %271 = vmatpush2.msra.mxu0 0.0
  %272 = vmatprep.subr.mxu0 0.0
  %273 = vmatpush2.msra.mxu0 0.0
  %274 = vmatprep.subr.mxu0 0.0
  %275 = vmatpush2.msra.mxu0 0.0
  %276 = vmatprep.subr.mxu0 0.0
  %277 = vmatpush2.msra.mxu0 0.0
  %278 = vmatprep.subr.mxu0 0.0
  %279 = vmatpush2.msra.mxu0 0.0
  %280 = vmatprep.mubr.f32.mxu0 0.0
  %281 = vmatmul.mubr.f32.gmra.mxu0 %v214
  %v282 = vpop.f32.mrf.mxu0
  %v283 = vadd.f32 %v210, %v282
  %v284 = vpop.f32.mrf.mxu0
  %285 = vdwg.mxu0
  %v286 = vmax.f32 %v283, 0.0
  %v287 = vld [vmem:[%s7] sm:$0xff]
  %v288 = vld [vmem:[%s7 + $0x8] sm:$0xff]
  %v289 = vld [vmem:[%s7 + $0x10] sm:$0xff]
  %v290 = vld [vmem:[%s7 + $0x18] sm:$0xff]
  %v291 = vld [vmem:[%s7 + $0x20] sm:$0xff]
  %v292 = vld [vmem:[%s7 + $0x28] sm:$0xff]
  %v293 = vld [vmem:[%s7 + $0x30] sm:$0xff]
  %v294 = vld [vmem:[%s7 + $0x38] sm:$0xff]
  %v295 = vld [vmem:[%s8] sm:$0x1]
  %v297 = vlaneseq
  %v298 = vshrl.u32 %v297, 7
  %v299 = vsub.s32 0, %v298
  %v300 = vrot.slane %v295, %v299
  %v303 = vsel %vm212, %v286, 0
  %305 = vmatprep.subr.mxu0 0.0
  %306 = vmatpush1.msra.mxu0 0.0
  %307 = vmatprep.subr.mxu0 0.0
  %308 = vmatpush1.msra.mxu0 0.0
  %309 = vmatprep.subr.mxu0 0.0
  %310 = vmatpush1.msra.mxu0 0.0
  %311 = vmatprep.subr.mxu0 0.0
  %312 = vmatpush1.msra.mxu0 0.0
  %313 = vmatprep.subr.mxu0 0.0
  %314 = vmatpush1.msra.mxu0 0.0
  %315 = vmatprep.subr.mxu0 0.0
  %316 = vmatpush1.msra.mxu0 0.0
  %317 = vmatprep.subr.mxu0 0.0
  %318 = vmatpush1.msra.mxu0 0.0
  %319 = vmatprep.subr.mxu0 0.0
  %320 = vmatpush1.msra.mxu0 0.0
  %321 = vmatprep.subr.mxu0 0.0
  %322 = vmatpush1.msra.mxu0 %v294
  %323 = vmatprep.subr.mxu0 0.0
  %324 = vmatpush1.msra.mxu0 %v293
  %325 = vmatprep.subr.mxu0 0.0
  %326 = vmatpush1.msra.mxu0 %v292
  %327 = vmatprep.subr.mxu0 0.0
  %328 = vmatpush1.msra.mxu0 %v291
  %329 = vmatprep.subr.mxu0 0.0
  %330 = vmatpush1.msra.mxu0 %v290
  %331 = vmatprep.subr.mxu0 0.0
  %332 = vmatpush1.msra.mxu0 %v289
  %333 = vmatprep.subr.mxu0 0.0
  %334 = vmatpush1.msra.mxu0 %v288
  %335 = vmatprep.subr.mxu0 0.0
  %336 = vmatpush1.msra.mxu0 %v287
  %337 = vmatprep.subr.mxu0 0.0
  %338 = vmatpush2.msra.mxu0 0.0
  %339 = vmatprep.subr.mxu0 0.0
  %340 = vmatpush2.msra.mxu0 0.0
  %341 = vmatprep.subr.mxu0 0.0
  %342 = vmatpush2.msra.mxu0 0.0
  %343 = vmatprep.subr.mxu0 0.0
  %344 = vmatpush2.msra.mxu0 0.0
  %345 = vmatprep.subr.mxu0 0.0
  %346 = vmatpush2.msra.mxu0 0.0
  %347 = vmatprep.subr.mxu0 0.0
  %348 = vmatpush2.msra.mxu0 0.0
  %349 = vmatprep.subr.mxu0 0.0
  %350 = vmatpush2.msra.mxu0 0.0
  %351 = vmatprep.subr.mxu0 0.0
  %352 = vmatpush2.msra.mxu0 0.0
  %353 = vmatprep.subr.mxu0 0.0
  %354 = vmatpush2.msra.mxu0 0.0
  %355 = vmatprep.subr.mxu0 0.0
  %356 = vmatpush2.msra.mxu0 0.0
  %357 = vmatprep.subr.mxu0 0.0
  %358 = vmatpush2.msra.mxu0 0.0
  %359 = vmatprep.subr.mxu0 0.0
  %360 = vmatpush2.msra.mxu0 0.0
  %361 = vmatprep.subr.mxu0 0.0
  %362 = vmatpush2.msra.mxu0 0.0
  %363 = vmatprep.subr.mxu0 0.0
  %364 = vmatpush2.msra.mxu0 0.0
  %365 = vmatprep.subr.mxu0 0.0
  %366 = vmatpush2.msra.mxu0 0.0
  %367 = vmatprep.subr.mxu0 0.0
  %368 = vmatpush2.msra.mxu0 0.0
  %369 = vmatprep.mubr.f32.mxu0 0.0
  %370 = vmatmul.mubr.f32.gmra.mxu0 %v303
  %v371 = vpop.f32.mrf.mxu0
  %v372 = vadd.f32 %v300, %v371
  %v373 = vpop.f32.mrf.mxu0
  %374 = vdwg.mxu0
  %vm375 = vcmask 9216
  %376 = vst.msk [vmem:[%s9] sm:$0x3] %vm375, %v372
  // Predicated region
  $region38: #{critic_forward.1} parent=0 // pred_check
    _
  $region39: #{critic_forward.1} parent=0 // pred_check_branch
    %378 = sbr.rel (0) target = $region41
  $region40: #{critic_forward.1} parent=0 // pred_region
    _
  $region41: #{critic_forward.1} parent=0 // pred_fallthru
    _
  // Predicated region
  $region42: #{critic_forward.1} parent=0 // pred_check
    _
  $region43: #{critic_forward.1} parent=0 // pred_check_branch
    %380 = sbr.rel (0) target = $region45
  $region44: #{critic_forward.1} parent=0 // pred_region
    _
  $region45: #{critic_forward.1} parent=0 // pred_fallthru
    _

</llo_original>
